<compile_context>
chip_gen: v7x
topology: tpu7x:2x2x1
jax: 0.10.0
libtpu: 0.0.40
codegen_flags: <defaults>
</compile_context>

<pallas_src>
import functools

import jax
import jax.numpy as jnp
from jax import lax
from jax.experimental import pallas as pl
from jax.experimental.pallas import tpu as pltpu

BIG = 1e8          # same fill value as torch.full_like(loss, 100000000.0)
_PAD_COORD = 1e9   # folded into padded / invalid gt rows -> distance >> BIG


def _round_up(x: int, m: int) -> int:
    return (x + m - 1) // m * m


def _choose_tile_r(P: int, N: int, max_tile_p: int) -> int:
    """Pick the number of 128-lane rows of predictions processed per grid step."""
    r_total = pl.cdiv(P, 128)
    max_tile_r = max(1, max_tile_p // 128)
    # v7x has 2 TensorCores: keep >= 2 parallel grid steps when there is enough
    # work to split (neutral on single-TC v5e/v6e).
    if N == 1 and r_total >= 16:
        max_tile_r = min(max_tile_r, _round_up(pl.cdiv(r_total, 2), 8))
    if r_total <= max_tile_r:
        return r_total                      # one full-extent tile per image
    return max(8, (max_tile_r // 8) * 8)    # multi-tile: sublane-aligned tile


def box_projection_kernel(gt_ref, pred_ref, out_ref, *, g_count: int):
    """gt_ref:  SMEM f32[N*4*G]  (mask folded into coords)
    pred_ref: VMEM f32[4, tile_r, 128]  (coordinate-major, lane-dense predictions)
    out_ref:  VMEM f32[tile_r, 128]."""
    i = pl.program_id(0)

    # Dense per-coordinate prediction slabs; hoisted out of the gt loop.
    p0 = pred_ref[0]
    p1 = pred_ref[1]
    p2 = pred_ref[2]
    p3 = pred_ref[3]

    base = i * (4 * g_count)

    def body(g, run_min):
        off = base + 4 * g
        # Scalar gt coords from SMEM, splat against the dense pred slabs (pure VPU).
        d = (jnp.abs(p0 - gt_ref[off])
             + jnp.abs(p1 - gt_ref[off + 1])
             + jnp.abs(p2 - gt_ref[off + 2])
             + jnp.abs(p3 - gt_ref[off + 3]))
        return jnp.minimum(run_min, d)

    init = jnp.full(p0.shape, jnp.inf, dtype=jnp.float32)
    unroll = g_count if g_count <= 8 else 8
    run_min = lax.fori_loop(0, g_count, body, init, unroll=unroll)

    # Invalid (masked) gt rows were folded to huge coords, so min >= BIG means the
    # closest "gt" is padding -> zero, matching the reference gather-based masking.
    out_ref[...] = jnp.where(run_min < jnp.float32(BIG), run_min, jnp.float32(0.0))


def box_projection_loss(pred_boxes, gt_padded, gt_masks, *, max_tile_p: int = 2048):
    """pred_boxes: [N, P, 4] f32, gt_padded: [N, G, 4] f32, gt_masks: [N, G] bool
    returns per-prediction projection loss [N, P] f32."""
    N, P, _ = pred_boxes.shape
    G = gt_padded.shape[1]
    if G == 0:
        return jnp.zeros((N, P), jnp.float32)

    tile_r = _choose_tile_r(P, N, max_tile_p)
    r_pad = _round_up(pl.cdiv(P, 128), tile_r)
    p_pad = r_pad * 128

    pred = pred_boxes.astype(jnp.float32)
    if p_pad != P:
        pred = jnp.pad(pred, ((0, 0), (0, p_pad - P), (0, 0)))
    # Coordinate-major, lane-dense layout: [N, 4, rows, 128].
    # TODO(synk): this pad+transpose is one extra HBM pass over pred; fold it into
    # the producer of pred_boxes when integrating (mainly relevant on v5e).
    pred_resh = jnp.transpose(pred, (0, 2, 1)).reshape(N, 4, r_pad, 128)

    # Fold validity into coordinates, flatten for 1-D SMEM (no 2-D SMEM padding).
    gt_filled = jnp.where(gt_masks[..., None], gt_padded.astype(jnp.float32),
                          jnp.float32(_PAD_COORD))
    gt_flat = gt_filled.reshape(N * G * 4)

    kernel = functools.partial(box_projection_kernel, g_count=G)
    grid = (N, r_pad // tile_r)
    out = pl.pallas_call(
        kernel,
        out_shape=jax.ShapeDtypeStruct((N, r_pad, 128), jnp.float32),
        grid_spec=pltpu.PrefetchScalarGridSpec(
            num_scalar_prefetch=0,
            grid=grid,
            in_specs=[
                # Whole gt table resident in SMEM; read as scalars in the kernel.
                pl.BlockSpec(memory_space=pltpu.MemorySpace.SMEM),
                # Dense pred tile: 4 coordinate slabs of (tile_r, 128) predictions.
                pl.BlockSpec((pl.Squeezed(), 4, tile_r, 128),
                             lambda i, j: (i, 0, j, 0)),
            ],
            out_specs=pl.BlockSpec((pl.Squeezed(), tile_r, 128),
                                   lambda i, j: (i, j, 0)),
        ),
        compiler_params=pltpu.CompilerParams(
            dimension_semantics=("parallel", "parallel")),
    )(gt_flat, pred_resh)
    return out.reshape(N, p_pad)[:, :P]


def reference_loss(pred_boxes, gt_padded, gt_masks):
    """Pure-JAX reference mirroring the PyTorch forward (projection loss part)."""
    diff = jnp.abs(pred_boxes[:, :, None, :] - gt_padded[:, None, :, :]).sum(-1)  # [N,P,G]
    filled = jnp.where(gt_masks[:, None, :], diff, jnp.float32(BIG))
    min_loss = filled.min(-1)
    idx = filled.argmin(-1)
    gathered = jnp.take_along_axis(gt_masks, idx, axis=1)
    return jnp.where(gathered, min_loss, jnp.zeros_like(min_loss))


def _make_case(key, N, P, G, num_gt):
    k_pred, k_gt = jax.random.split(key)
    pred_boxes = jax.random.uniform(k_pred, (N, P, 4), jnp.float32) * 32.0
    gt_raw = jax.random.uniform(k_gt, (N, G, 4), jnp.float32) * 32.0
    gt_masks = jnp.asarray(
        [[g < num_gt[i] for g in range(G)] for i in range(N)], dtype=jnp.bool_)
    gt_padded = jnp.where(gt_masks[..., None], gt_raw, 0.0)
    return pred_boxes, gt_padded, gt_masks


if __name__ == "__main__":
    key = jax.random.PRNGKey(0)
    k1, k2, k3 = jax.random.split(key, 3)

    # Case 1: tiny — N images, P predicted boxes, variable gt counts padded to G.
    pred_boxes, gt_padded, gt_masks = _make_case(k1, N=2, P=8, G=5, num_gt=[5, 3])
    loss = jax.block_until_ready(box_projection_loss(pred_boxes, gt_padded, gt_masks))
    ref = reference_loss(pred_boxes, gt_padded, gt_masks)
    assert bool(jnp.all(jnp.isfinite(loss)))
    assert jnp.allclose(loss, ref, atol=1e-4, rtol=1e-5), (loss, ref)

    # Case 1b: image 1 has zero gt boxes -> its projection loss must be 0.
    gt_masks_e = gt_masks.at[1].set(False)
    gt_padded_e = jnp.where(gt_masks_e[..., None], gt_padded, 0.0)
    loss_e = jax.block_until_ready(
        box_projection_loss(pred_boxes, gt_padded_e, gt_masks_e))
    ref_e = reference_loss(pred_boxes, gt_padded_e, gt_masks_e)
    assert bool(jnp.all(jnp.isfinite(loss_e)))
    assert jnp.allclose(loss_e, ref_e, atol=1e-4, rtol=1e-5), (loss_e, ref_e)
    assert jnp.allclose(loss_e[1], 0.0)

    # Case 2: non-multiple-of-128 P (exercises P padding, single full-extent tile).
    pred_b2, gt_p2, gt_m2 = _make_case(k2, N=2, P=300, G=17, num_gt=[17, 9])
    loss2 = jax.block_until_ready(box_projection_loss(pred_b2, gt_p2, gt_m2))
    ref2 = reference_loss(pred_b2, gt_p2, gt_m2)
    assert jnp.allclose(loss2, ref2, atol=1e-4, rtol=1e-5)

    # Case 3: multi-tile path (sublane-aligned tile_r, P-tile grid axis > 1).
    pred_b3, gt_p3, gt_m3 = _make_case(k3, N=2, P=1200, G=7, num_gt=[7, 4])
    loss3 = jax.block_until_ready(
        box_projection_loss(pred_b3, gt_p3, gt_m3, max_tile_p=1024))
    ref3 = reference_loss(pred_b3, gt_p3, gt_m3)
    assert jnp.allclose(loss3, ref3, atol=1e-4, rtol=1e-5)

    # TODO(synk): the classification branch (focal / cross-entropy vs the class of the
    # closest gt box, needing argmin indices + gt_classes gather), the per-image
    # Instances / loss_dict accumulation and the list-of-dicts padding remain
    # host-side Python/JAX glue; the kernel returns the [N, P] projection loss.
    print("KERNEL_OK")
</pallas_src>

<mosaic_0001>
module attributes {stable_mosaic.version = 11 : i64} {
  func.func @box_projection_kernel(%arg0: i32, %arg1: i32, %arg2: memref<40xf32, #tpu.memory_space<smem>>, %arg3: memref<1x4x1x128xf32, #tpu.memory_space<vmem>>, %arg4: memref<1x1x128xf32, #tpu.memory_space<vmem>>) attributes {dimension_semantics = [#tpu.dimension_semantics<parallel>, #tpu.dimension_semantics<parallel>], iteration_bounds = array<i64: 2, 1>, scalar_prefetch = 0 : i64, scratch_operands = 0 : i64, tpu.core_type = #tpu.core_type<tc>, window_params = [{transform_indices = @transform_0, window_bounds = array<i64: 40>}, {transform_indices = @transform_1, window_bounds = array<i64: 1, 4, 1, 128>}, {transform_indices = @transform_2, window_bounds = array<i64: 1, 1, 128>}]} {
    %c0 = arith.constant 0 : index
    %c0_0 = arith.constant 0 : index
    %c0_1 = arith.constant 0 : index
    %c0_2 = arith.constant 0 : index
    %0 = vector.load %arg3[%c0, %c0_0, %c0_1, %c0_2] : memref<1x4x1x128xf32, #tpu.memory_space<vmem>>, vector<1x1x1x128xf32>
    %1 = vector.shape_cast %0 : vector<1x1x1x128xf32> to vector<1x128xf32>
    %c0_3 = arith.constant 0 : index
    %c1 = arith.constant 1 : index
    %c0_4 = arith.constant 0 : index
    %c0_5 = arith.constant 0 : index
    %2 = vector.load %arg3[%c0_3, %c1, %c0_4, %c0_5] : memref<1x4x1x128xf32, #tpu.memory_space<vmem>>, vector<1x1x1x128xf32>
    %3 = vector.shape_cast %2 : vector<1x1x1x128xf32> to vector<1x128xf32>
    %c0_6 = arith.constant 0 : index
    %c2 = arith.constant 2 : index
    %c0_7 = arith.constant 0 : index
    %c0_8 = arith.constant 0 : index
    %4 = vector.load %arg3[%c0_6, %c2, %c0_7, %c0_8] : memref<1x4x1x128xf32, #tpu.memory_space<vmem>>, vector<1x1x1x128xf32>
    %5 = vector.shape_cast %4 : vector<1x1x1x128xf32> to vector<1x128xf32>
    %c0_9 = arith.constant 0 : index
    %c3 = arith.constant 3 : index
    %c0_10 = arith.constant 0 : index
    %c0_11 = arith.constant 0 : index
    %6 = vector.load %arg3[%c0_9, %c3, %c0_10, %c0_11] : memref<1x4x1x128xf32, #tpu.memory_space<vmem>>, vector<1x1x1x128xf32>
    %7 = vector.shape_cast %6 : vector<1x1x1x128xf32> to vector<1x128xf32>
    %c20_i32 = arith.constant 20 : i32
    %8 = arith.muli %arg0, %c20_i32 : i32
    %cst = arith.constant 0x7F800000 : f32
    %9 = vector.broadcast %cst : f32 to vector<1x128xf32>
    %c0_i32 = arith.constant 0 : i32
    %c4_i32 = arith.constant 4 : i32
    %10 = arith.muli %c4_i32, %c0_i32 : i32
    %11 = arith.addi %8, %10 : i32
    %12 = arith.index_cast %11 : i32 to index
    %13 = memref.load %arg2[%12] : memref<40xf32, #tpu.memory_space<smem>>
    %14 = vector.broadcast %13 : f32 to vector<1x128xf32>
    %15 = arith.subf %1, %14 : vector<1x128xf32>
    %16 = math.absf %15 : vector<1x128xf32>
    %c1_i32 = arith.constant 1 : i32
    %17 = arith.addi %11, %c1_i32 : i32
    %18 = arith.index_cast %17 : i32 to index
    %19 = memref.load %arg2[%18] : memref<40xf32, #tpu.memory_space<smem>>
    %20 = vector.broadcast %19 : f32 to vector<1x128xf32>
    %21 = arith.subf %3, %20 : vector<1x128xf32>
    %22 = math.absf %21 : vector<1x128xf32>
    %23 = arith.addf %16, %22 : vector<1x128xf32>
    %c2_i32 = arith.constant 2 : i32
    %24 = arith.addi %11, %c2_i32 : i32
    %25 = arith.index_cast %24 : i32 to index
    %26 = memref.load %arg2[%25] : memref<40xf32, #tpu.memory_space<smem>>
    %27 = vector.broadcast %26 : f32 to vector<1x128xf32>
    %28 = arith.subf %5, %27 : vector<1x128xf32>
    %29 = math.absf %28 : vector<1x128xf32>
    %30 = arith.addf %23, %29 : vector<1x128xf32>
    %c3_i32 = arith.constant 3 : i32
    %31 = arith.addi %11, %c3_i32 : i32
    %32 = arith.index_cast %31 : i32 to index
    %33 = memref.load %arg2[%32] : memref<40xf32, #tpu.memory_space<smem>>
    %34 = vector.broadcast %33 : f32 to vector<1x128xf32>
    %35 = arith.subf %7, %34 : vector<1x128xf32>
    %36 = math.absf %35 : vector<1x128xf32>
    %37 = arith.addf %30, %36 : vector<1x128xf32>
    %38 = arith.minimumf %9, %37 : vector<1x128xf32>
    %c1_i32_12 = arith.constant 1 : i32
    %c4_i32_13 = arith.constant 4 : i32
    %39 = arith.muli %c4_i32_13, %c1_i32_12 : i32
    %40 = arith.addi %8, %39 : i32
    %41 = arith.index_cast %40 : i32 to index
    %42 = memref.load %arg2[%41] : memref<40xf32, #tpu.memory_space<smem>>
    %43 = vector.broadcast %42 : f32 to vector<1x128xf32>
    %44 = arith.subf %1, %43 : vector<1x128xf32>
    %45 = math.absf %44 : vector<1x128xf32>
    %c1_i32_14 = arith.constant 1 : i32
    %46 = arith.addi %40, %c1_i32_14 : i32
    %47 = arith.index_cast %46 : i32 to index
    %48 = memref.load %arg2[%47] : memref<40xf32, #tpu.memory_space<smem>>
    %49 = vector.broadcast %48 : f32 to vector<1x128xf32>
    %50 = arith.subf %3, %49 : vector<1x128xf32>
    %51 = math.absf %50 : vector<1x128xf32>
    %52 = arith.addf %45, %51 : vector<1x128xf32>
    %c2_i32_15 = arith.constant 2 : i32
    %53 = arith.addi %40, %c2_i32_15 : i32
    %54 = arith.index_cast %53 : i32 to index
    %55 = memref.load %arg2[%54] : memref<40xf32, #tpu.memory_space<smem>>
    %56 = vector.broadcast %55 : f32 to vector<1x128xf32>
    %57 = arith.subf %5, %56 : vector<1x128xf32>
    %58 = math.absf %57 : vector<1x128xf32>
    %59 = arith.addf %52, %58 : vector<1x128xf32>
    %c3_i32_16 = arith.constant 3 : i32
    %60 = arith.addi %40, %c3_i32_16 : i32
    %61 = arith.index_cast %60 : i32 to index
    %62 = memref.load %arg2[%61] : memref<40xf32, #tpu.memory_space<smem>>
    %63 = vector.broadcast %62 : f32 to vector<1x128xf32>
    %64 = arith.subf %7, %63 : vector<1x128xf32>
    %65 = math.absf %64 : vector<1x128xf32>
    %66 = arith.addf %59, %65 : vector<1x128xf32>
    %67 = arith.minimumf %38, %66 : vector<1x128xf32>
    %c2_i32_17 = arith.constant 2 : i32
    %c4_i32_18 = arith.constant 4 : i32
    %68 = arith.muli %c4_i32_18, %c2_i32_17 : i32
    %69 = arith.addi %8, %68 : i32
    %70 = arith.index_cast %69 : i32 to index
    %71 = memref.load %arg2[%70] : memref<40xf32, #tpu.memory_space<smem>>
    %72 = vector.broadcast %71 : f32 to vector<1x128xf32>
    %73 = arith.subf %1, %72 : vector<1x128xf32>
    %74 = math.absf %73 : vector<1x128xf32>
    %c1_i32_19 = arith.constant 1 : i32
    %75 = arith.addi %69, %c1_i32_19 : i32
    %76 = arith.index_cast %75 : i32 to index
    %77 = memref.load %arg2[%76] : memref<40xf32, #tpu.memory_space<smem>>
    %78 = vector.broadcast %77 : f32 to vector<1x128xf32>
    %79 = arith.subf %3, %78 : vector<1x128xf32>
    %80 = math.absf %79 : vector<1x128xf32>
    %81 = arith.addf %74, %80 : vector<1x128xf32>
    %c2_i32_20 = arith.constant 2 : i32
    %82 = arith.addi %69, %c2_i32_20 : i32
    %83 = arith.index_cast %82 : i32 to index
    %84 = memref.load %arg2[%83] : memref<40xf32, #tpu.memory_space<smem>>
    %85 = vector.broadcast %84 : f32 to vector<1x128xf32>
    %86 = arith.subf %5, %85 : vector<1x128xf32>
    %87 = math.absf %86 : vector<1x128xf32>
    %88 = arith.addf %81, %87 : vector<1x128xf32>
    %c3_i32_21 = arith.constant 3 : i32
    %89 = arith.addi %69, %c3_i32_21 : i32
    %90 = arith.index_cast %89 : i32 to index
    %91 = memref.load %arg2[%90] : memref<40xf32, #tpu.memory_space<smem>>
    %92 = vector.broadcast %91 : f32 to vector<1x128xf32>
    %93 = arith.subf %7, %92 : vector<1x128xf32>
    %94 = math.absf %93 : vector<1x128xf32>
    %95 = arith.addf %88, %94 : vector<1x128xf32>
    %96 = arith.minimumf %67, %95 : vector<1x128xf32>
    %c3_i32_22 = arith.constant 3 : i32
    %c4_i32_23 = arith.constant 4 : i32
    %97 = arith.muli %c4_i32_23, %c3_i32_22 : i32
    %98 = arith.addi %8, %97 : i32
    %99 = arith.index_cast %98 : i32 to index
    %100 = memref.load %arg2[%99] : memref<40xf32, #tpu.memory_space<smem>>
    %101 = vector.broadcast %100 : f32 to vector<1x128xf32>
    %102 = arith.subf %1, %101 : vector<1x128xf32>
    %103 = math.absf %102 : vector<1x128xf32>
    %c1_i32_24 = arith.constant 1 : i32
    %104 = arith.addi %98, %c1_i32_24 : i32
    %105 = arith.index_cast %104 : i32 to index
    %106 = memref.load %arg2[%105] : memref<40xf32, #tpu.memory_space<smem>>
    %107 = vector.broadcast %106 : f32 to vector<1x128xf32>
    %108 = arith.subf %3, %107 : vector<1x128xf32>
    %109 = math.absf %108 : vector<1x128xf32>
    %110 = arith.addf %103, %109 : vector<1x128xf32>
    %c2_i32_25 = arith.constant 2 : i32
    %111 = arith.addi %98, %c2_i32_25 : i32
    %112 = arith.index_cast %111 : i32 to index
    %113 = memref.load %arg2[%112] : memref<40xf32, #tpu.memory_space<smem>>
    %114 = vector.broadcast %113 : f32 to vector<1x128xf32>
    %115 = arith.subf %5, %114 : vector<1x128xf32>
    %116 = math.absf %115 : vector<1x128xf32>
    %117 = arith.addf %110, %116 : vector<1x128xf32>
    %c3_i32_26 = arith.constant 3 : i32
    %118 = arith.addi %98, %c3_i32_26 : i32
    %119 = arith.index_cast %118 : i32 to index
    %120 = memref.load %arg2[%119] : memref<40xf32, #tpu.memory_space<smem>>
    %121 = vector.broadcast %120 : f32 to vector<1x128xf32>
    %122 = arith.subf %7, %121 : vector<1x128xf32>
    %123 = math.absf %122 : vector<1x128xf32>
    %124 = arith.addf %117, %123 : vector<1x128xf32>
    %125 = arith.minimumf %96, %124 : vector<1x128xf32>
    %c4_i32_27 = arith.constant 4 : i32
    %c4_i32_28 = arith.constant 4 : i32
    %126 = arith.muli %c4_i32_28, %c4_i32_27 : i32
    %127 = arith.addi %8, %126 : i32
    %128 = arith.index_cast %127 : i32 to index
    %129 = memref.load %arg2[%128] : memref<40xf32, #tpu.memory_space<smem>>
    %130 = vector.broadcast %129 : f32 to vector<1x128xf32>
    %131 = arith.subf %1, %130 : vector<1x128xf32>
    %132 = math.absf %131 : vector<1x128xf32>
    %c1_i32_29 = arith.constant 1 : i32
    %133 = arith.addi %127, %c1_i32_29 : i32
    %134 = arith.index_cast %133 : i32 to index
    %135 = memref.load %arg2[%134] : memref<40xf32, #tpu.memory_space<smem>>
    %136 = vector.broadcast %135 : f32 to vector<1x128xf32>
    %137 = arith.subf %3, %136 : vector<1x128xf32>
    %138 = math.absf %137 : vector<1x128xf32>
    %139 = arith.addf %132, %138 : vector<1x128xf32>
    %c2_i32_30 = arith.constant 2 : i32
    %140 = arith.addi %127, %c2_i32_30 : i32
    %141 = arith.index_cast %140 : i32 to index
    %142 = memref.load %arg2[%141] : memref<40xf32, #tpu.memory_space<smem>>
    %143 = vector.broadcast %142 : f32 to vector<1x128xf32>
    %144 = arith.subf %5, %143 : vector<1x128xf32>
    %145 = math.absf %144 : vector<1x128xf32>
    %146 = arith.addf %139, %145 : vector<1x128xf32>
    %c3_i32_31 = arith.constant 3 : i32
    %147 = arith.addi %127, %c3_i32_31 : i32
    %148 = arith.index_cast %147 : i32 to index
    %149 = memref.load %arg2[%148] : memref<40xf32, #tpu.memory_space<smem>>
    %150 = vector.broadcast %149 : f32 to vector<1x128xf32>
    %151 = arith.subf %7, %150 : vector<1x128xf32>
    %152 = math.absf %151 : vector<1x128xf32>
    %153 = arith.addf %146, %152 : vector<1x128xf32>
    %154 = arith.minimumf %125, %153 : vector<1x128xf32>
    %c5_i32 = arith.constant 5 : i32
    %cst_32 = arith.constant 1.000000e+08 : f32
    %155 = vector.broadcast %cst_32 : f32 to vector<1x128xf32>
    %156 = arith.cmpf olt, %154, %155 : vector<1x128xf32>
    %cst_33 = arith.constant 0.000000e+00 : f32
    %157 = vector.broadcast %cst_33 : f32 to vector<1x128xf32>
    %158 = arith.select %156, %154, %157 : vector<1x128xi1>, vector<1x128xf32>
    %c0_34 = arith.constant 0 : index
    %c0_35 = arith.constant 0 : index
    %c0_36 = arith.constant 0 : index
    %159 = vector.load %arg4[%c0_34, %c0_35, %c0_36] : memref<1x1x128xf32, #tpu.memory_space<vmem>>, vector<1x1x128xf32>
    %160 = vector.shape_cast %159 : vector<1x1x128xf32> to vector<1x128xf32>
    %161 = vector.shape_cast %158 : vector<1x128xf32> to vector<1x1x128xf32>
    tpu.vector_store %arg4[%c0_34, %c0_35, %c0_36], %161 {strides = array<i32>} : memref<1x1x128xf32, #tpu.memory_space<vmem>>, vector<1x1x128xf32>,
    return
  }
  func.func @transform_0(%arg0: i32, %arg1: i32) -> i32 {
    %c0_i32 = arith.constant 0 : i32
    %c0_i32_0 = arith.constant 0 : i32
    return %c0_i32 : i32
  }
  func.func @transform_1(%arg0: i32, %arg1: i32) -> (i32, i32, i32, i32) {
    %c0_i32 = arith.constant 0 : i32
    %c0_i32_0 = arith.constant 0 : i32
    %c0_i32_1 = arith.constant 0 : i32
    return %arg0, %c0_i32, %arg1, %c0_i32_0 : i32, i32, i32, i32
  }
  func.func @transform_2(%arg0: i32, %arg1: i32) -> (i32, i32, i32) {
    %c0_i32 = arith.constant 0 : i32
    %c0_i32_0 = arith.constant 0 : i32
    return %arg0, %arg1, %c0_i32 : i32, i32, i32
  }
}

</mosaic_0001>

<llo_original>
// kernel: tpu_custom_call.1
$region0: #{tpu_custom_call.1}
  #allocation0 [shape = 'u32[]', space=smem, size = 0x4, offset = 0x4, fixed_abs, tag = 'smem constant byte address 0x4 - core index']
  #allocation1 [shape = 'u32[144,128]{1,0:T(1,128)}', space=vmem, size = 0x12000, scoped, tag = 'internal scratch']
  %s0 = inlined_call_operand.hbm [shape: f32[40], index: 0, kind: input, shape index: {}]
  %s1 = inlined_call_operand.hbm [shape: f32[2,4,1,128], index: 1, kind: input, shape index: {}]
  %s2 = inlined_call_operand.hbm [shape: f32[2,1,128], index: 2, kind: output, shape index: {}]
  %s3 = sld [smem:[#allocation0]]
  $region49: #{tpu_custom_call.1} parent=0
    _
  %s5 = ssub.s32 1, %s3
  %s6 = scalar_select 0, %s5, %s3
  $region1: #{tpu_custom_call.1} parent=0
    #allocation2 [shape = 'u8[512]{0}', space=smem, size = 0x200, scoped, tag = 'input window, operand 0, single buffered']
    #allocation3 [shape = 's32[2]{0}', space=sflag, size = 0x8, scoped, tag = 'scoped memory for tpu_custom_call.1']
    #allocation4 [shape = 's32[2]{0}', space=sflag, size = 0x8, scoped, tag = 'scoped memory for tpu_custom_call.1']
    #allocation5 [shape = 's32[2]{0}', space=sflag, size = 0x8, scoped, tag = 'scoped memory for tpu_custom_call.1']
    #allocation6 [shape = 'u8[4096]{0}', space=vmem, size = 0x1000, scoped, tag = 'input window, operand 1']
    #allocation7 [shape = 'u8[1024]{0}', space=vmem, size = 0x400, scoped, tag = 'output window, operand 0']
    %7 = vsyncpa [#allocation5], 0
    %8 = vsyncpa [#allocation3], 0
    %s9 = scalar_lea.sflag [#allocation3], 1
    %10 = vsyncpa %s9, 0
    %11 = vsyncpa [#allocation4], 0
    %s12 = scalar_lea.sflag [#allocation4], 1
    %13 = vsyncpa %s12, 0
    loop: start=0, step=1, limit=4
    $region2: #{tpu_custom_call.1} parent=1 // loop_pre_header
      _
    $region3: #{tpu_custom_call.1} parent=1 // loop_header
      %s15 = sphi 0, %s19
      %p16 = scmp.ge.s32.totalorder %s15, 4
      %s22 = sphi 0, %s34
      %s23 = sphi 0, %s30
      %s24 = sphi 0, %s22
      %s25 = sphi 0, %s23
      %s26 = sphi 0, %s24
      %s27 = sphi 0, %s25
      %s35 = sphi 0, %s35
      %s37 = sphi 0, %s35
      %s38 = sphi 0, %s37
      %s52 = sphi 0, %s38
      %s60 = sphi 0, %s62
      %s63 = sphi 0, %s60
      %s64 = sphi 0, %s63
      %s80 = sphi 0, %s64
      %s88 = sphi 0, %s90
      %s91 = sphi 0, %s88
      %s92 = sphi 0, %s91
      %s108 = sphi 0, %s92
    $region4: #{tpu_custom_call.1} parent=1 // loop_header_branch
      %18 = sbr.rel (%p16) target = $region8
    $region5: #{tpu_custom_call.1} parent=1 // loop_body
      %s20 = ssub.s32 %s15, 1
      %s21 = ssub.s32 %s15, 2
      %s28 = sadd.s32 1, %s23
      %p29 = scmp.ge.s32.totalorder %s28, 1
      %s30 = scalar_select %p29, 0, %s28
      %s31 = sadd.s32 1, %s22
      %s32 = scalar_select %p29, %s31, %s22
      %p33 = scmp.ge.s32.totalorder %s32, 2
      %s34 = scalar_select %p33, 0, %s32
      %s36 = sadd.s32 %s35, 1
      %p39 = scmp.eq.s32.totalorder %s15, 1
      %p40 = scmp.ne.s32.totalorder %s35, %s37
      %p41 = scmp.eq.s32.totalorder %s15, 0
      %p42 = por %p40, %p41
      %p43 = scmp.ne.s32.totalorder %s35, %s37
      %p44 = scmp.eq.s32.totalorder %s20, 1
      %p45 = por %p43, %p44
      %p46 = scmp.ne.s32.totalorder %s37, %s38
      %p47 = scmp.eq.s32.totalorder %s20, 0
      %p48 = por %p46, %p47
      %p49 = scmp.ne.s32.totalorder %s37, %s38
      %p50 = scmp.eq.s32.totalorder %s21, 1
      %p51 = por %p49, %p50
      %p53 = scmp.ne.s32.totalorder %s38, %s52
      %p54 = scmp.eq.s32.totalorder %s21, 0
      %p55 = por %p53, %p54
      %s56 = ssub.s32 %s22, %s34
      %s57 = ssub.s32 %s23, %s30
      %s58 = sor.u32 %s56, %s57
      %p59 = scmp.eq.s32.totalorder %s58, 0
      %s61 = sadd.s32 %s60, 1
      %s62 = scalar_select %p59, %s60, %s61
      %p65 = pneg %p59
      %p66 = scmp.eq.s32.totalorder %s15, 1
      %p67 = por %p65, %p66
      %p68 = scmp.ne.s32.totalorder %s60, %s63
      %p69 = scmp.eq.s32.totalorder %s15, 0
      %p70 = por %p68, %p69
      %p71 = scmp.ne.s32.totalorder %s60, %s63
      %p72 = scmp.eq.s32.totalorder %s20, 1
      %p73 = por %p71, %p72
      %p74 = scmp.ne.s32.totalorder %s63, %s64
      %p75 = scmp.eq.s32.totalorder %s20, 0
      %p76 = por %p74, %p75
      %p77 = scmp.ne.s32.totalorder %s63, %s64
      %p78 = scmp.eq.s32.totalorder %s21, 1
      %p79 = por %p77, %p78
      %p81 = scmp.ne.s32.totalorder %s64, %s80
      %p82 = scmp.eq.s32.totalorder %s21, 0
      %p83 = por %p81, %p82
      %s84 = ssub.s32 %s22, %s34
      %s85 = ssub.s32 %s23, %s30
      %s86 = sor.u32 %s84, %s85
      %p87 = scmp.eq.s32.totalorder %s86, 0
      %s89 = sadd.s32 %s88, 1
      %s90 = scalar_select %p87, %s88, %s89
      %p93 = pneg %p87
      %p94 = scmp.eq.s32.totalorder %s15, 1
      %p95 = por %p93, %p94
      %p96 = scmp.ne.s32.totalorder %s88, %s91
      %p97 = scmp.eq.s32.totalorder %s15, 0
      %p98 = por %p96, %p97
      %p99 = scmp.ne.s32.totalorder %s88, %s91
      %p100 = scmp.eq.s32.totalorder %s20, 1
      %p101 = por %p99, %p100
      %p102 = scmp.ne.s32.totalorder %s91, %s92
      %p103 = scmp.eq.s32.totalorder %s20, 0
      %p104 = por %p102, %p103
      %p105 = scmp.ne.s32.totalorder %s91, %s92
      %p106 = scmp.eq.s32.totalorder %s21, 1
      %p107 = por %p105, %p106
      %p109 = scmp.ne.s32.totalorder %s92, %s108
      %p110 = scmp.eq.s32.totalorder %s21, 0
      %p111 = por %p109, %p110
      %p112 = scmp.le.s32.totalorder 1, %s15
      %p113 = scmp.lt.s32.totalorder %s15, 3
      %p114 = pnand %p112, %p113
      %p115 = pneg %p114
      // Predicated region
      $region9: #{tpu_custom_call.1} parent=5 // pred_check
        _
      $region10: #{tpu_custom_call.1} parent=5 // pred_check_branch
        %117 = sbr.rel (%p114) target = $region12
      $region11: #{tpu_custom_call.1} parent=5 // pred_region
        %s118 = ssub.s32 %s15, 1
        // Predicated region
        $region13: #{tpu_custom_call.1} parent=11 // pred_check
          %p119 = pneg %p48
        $region14: #{tpu_custom_call.1} parent=11 // pred_check_branch
          %121 = sbr.rel (%p119) target = $region16
        $region15: #{tpu_custom_call.1} parent=11 // pred_region
          %s123 = ssub.s32 16, 16
          %124 = vsyncadd [#allocation5], %s123
          %127 = dma.hbm_to_smem %s0, 16, [#allocation2], [#allocation5]
        $region16: #{tpu_custom_call.1} parent=11 // pred_fallthru
          _
      $region12: #{tpu_custom_call.1} parent=5 // pred_fallthru
        _
      %p128 = scmp.lt.s32.totalorder %s15, 2
      // Predicated region
      $region17: #{tpu_custom_call.1} parent=5 // pred_check
        %p129 = pneg %p128
      $region18: #{tpu_custom_call.1} parent=5 // pred_check_branch
        %131 = sbr.rel (%p129) target = $region20
      $region19: #{tpu_custom_call.1} parent=5 // pred_region
        // Predicated region
        $region21: #{tpu_custom_call.1} parent=19 // pred_check
          %p132 = pneg %p70
        $region22: #{tpu_custom_call.1} parent=19 // pred_check_branch
          %134 = sbr.rel (%p132) target = $region24
        $region23: #{tpu_custom_call.1} parent=19 // pred_region
          %s135 = sand.u32 %s60, 1
          %s136 = scalar_lea.sflag [#allocation3], %s135
          %s137 = sand.u32 %s60, 1
          %s138 = smul.addr %s137, 4
          %s139 = scalar_lea.vmem [#allocation6], %s138
          %s141 = ssub.s32 64, 64
          %142 = vsyncadd %s136, %s141
          %s143 = smul.addr %s22, 4
          %s144 = sadd.s32 %s23, %s143
          %s145 = smul.addr %s144, 16
          %s146 = scalar_lea.hbm %s1, %s145
          %s147 = sshll.u32 %s139, 4
          %s148 = int_to_ptr.vmem [resolvable:$true] %s147
          %153 = dma.hbm_to_vmem [thread:$0]  %s146, 64, %s148, %s136, 16, 16, 1
        $region24: #{tpu_custom_call.1} parent=19 // pred_fallthru
          _
      $region20: #{tpu_custom_call.1} parent=5 // pred_fallthru
        _
      %p154 = scmp.le.s32.totalorder 1, %s15
      %p155 = scmp.lt.s32.totalorder %s15, 3
      %p156 = pnand %p154, %p155
      %p157 = pneg %p156
      // Predicated region
      $region25: #{tpu_custom_call.1} parent=5 // pred_check
        _
      $region26: #{tpu_custom_call.1} parent=5 // pred_check_branch
        %159 = sbr.rel (%p156) target = $region28
      $region27: #{tpu_custom_call.1} parent=5 // pred_region
        %s160 = ssub.s32 %s15, 1
        // Predicated region
        $region29: #{tpu_custom_call.1} parent=27 // pred_check
          %p161 = pneg %p48
        $region30: #{tpu_custom_call.1} parent=27 // pred_check_branch
          %163 = sbr.rel (%p161) target = $region32
        $region31: #{tpu_custom_call.1} parent=27 // pred_region
          %164 = dma.done [#allocation5], 16
        $region32: #{tpu_custom_call.1} parent=27 // pred_fallthru
          _
        %s165 = sand.u32 %s63, 1
        %s166 = scalar_lea.sflag [#allocation3], %s165
        %s167 = sand.u32 %s63, 1
        %s168 = smul.addr %s167, 4
        %s169 = scalar_lea.vmem [#allocation6], %s168
        // Predicated region
        $region33: #{tpu_custom_call.1} parent=27 // pred_check
          %p170 = pneg %p76
        $region34: #{tpu_custom_call.1} parent=27 // pred_check_branch
          %172 = sbr.rel (%p170) target = $region36
        $region35: #{tpu_custom_call.1} parent=27 // pred_region
          %173 = dma.done %s166, 64
        $region36: #{tpu_custom_call.1} parent=27 // pred_fallthru
          _
        %174 = sfence
        %p175 = pneg %p48
        %p176 = pneg %p45
        %s177 = sand.u32 %s63, 1
        %s178 = scalar_lea.sflag [#allocation3], %s177
        %s179 = sand.u32 %s63, 1
        %s180 = smul.addr %s179, 4
        %s181 = scalar_lea.vmem [#allocation6], %s180
        %p182 = pneg %p76
        %p183 = pneg %p73
        %p184 = pneg %p104
        %p185 = pneg %p101
        %s186 = sand.u32 %s91, 1
        %s187 = scalar_lea.sflag [#allocation4], %s186
        %s188 = sand.u32 %s91, 1
        %s189 = scalar_lea.vmem [#allocation7], %s188
        %v190 = vld [vmem:[%s169] sm:$0x1]
        %s191 = scalar_lea.vmem %s169, 1 [#allocation6]
        %v192 = vld [vmem:[%s191] sm:$0x1]
        %s193 = scalar_lea.vmem %s169, 2 [#allocation6]
        %v194 = vld [vmem:[%s193] sm:$0x1]
        %s195 = scalar_lea.vmem %s169, 3 [#allocation6]
        %v196 = vld [vmem:[%s195] sm:$0x1]
        %s197 = smul.u32 %s24, 20
        %s198 = sld [smem:[#allocation2 + %s197]]
        %v199 = vstv %s198
        %v200 = vsub.f32 %v190, %v199
        %v201 = vand.u32 2147483647, %v200
        %s202 = sadd.s32 %s197, 1
        %s203 = sld [smem:[#allocation2 + %s202]]
        %v204 = vstv %s203
        %v205 = vsub.f32 %v192, %v204
        %v206 = vand.u32 2147483647, %v205
        %v207 = vadd.f32 %v201, %v206
        %s208 = sadd.s32 %s197, 2
        %s209 = sld [smem:[#allocation2 + %s208]]
        %v210 = vstv %s209
        %v211 = vsub.f32 %v194, %v210
        %v212 = vand.u32 2147483647, %v211
        %v213 = vadd.f32 %v207, %v212
        %s214 = sadd.s32 %s197, 3
        %s215 = sld [smem:[#allocation2 + %s214]]
        %v216 = vstv %s215
        %v217 = vsub.f32 %v196, %v216
        %v218 = vand.u32 2147483647, %v217
        %v219 = vadd.f32 %v213, %v218
        %s220 = sadd.s32 %s197, 4
        %s221 = sld [smem:[#allocation2 + %s220]]
        %v222 = vstv %s221
        %v223 = vsub.f32 %v190, %v222
        %v224 = vand.u32 2147483647, %v223
        %s225 = sadd.s32 %s197, 5
        %s226 = sld [smem:[#allocation2 + %s225]]
        %v227 = vstv %s226
        %v228 = vsub.f32 %v192, %v227
        %v229 = vand.u32 2147483647, %v228
        %v230 = vadd.f32 %v224, %v229
        %s231 = sadd.s32 %s197, 6
        %s232 = sld [smem:[#allocation2 + %s231]]
        %v233 = vstv %s232
        %v234 = vsub.f32 %v194, %v233
        %v235 = vand.u32 2147483647, %v234
        %v236 = vadd.f32 %v230, %v235
        %s237 = sadd.s32 %s197, 7
        %s238 = sld [smem:[#allocation2 + %s237]]
        %v239 = vstv %s238
        %v240 = vsub.f32 %v196, %v239
        %v241 = vand.u32 2147483647, %v240
        %v242 = vadd.f32 %v236, %v241
        %v243 = vmin.f32 %v219, %v242
        %s244 = sadd.s32 %s197, 8
        %s245 = sld [smem:[#allocation2 + %s244]]
        %v246 = vstv %s245
        %v247 = vsub.f32 %v190, %v246
        %v248 = vand.u32 2147483647, %v247
        %s249 = sadd.s32 %s197, 9
        %s250 = sld [smem:[#allocation2 + %s249]]
        %v251 = vstv %s250
        %v252 = vsub.f32 %v192, %v251
        %v253 = vand.u32 2147483647, %v252
        %v254 = vadd.f32 %v248, %v253
        %s255 = sadd.s32 %s197, 10
        %s256 = sld [smem:[#allocation2 + %s255]]
        %v257 = vstv %s256
        %v258 = vsub.f32 %v194, %v257
        %v259 = vand.u32 2147483647, %v258
        %v260 = vadd.f32 %v254, %v259
        %s261 = sadd.s32 %s197, 11
        %s262 = sld [smem:[#allocation2 + %s261]]
        %v263 = vstv %s262
        %v264 = vsub.f32 %v196, %v263
        %v265 = vand.u32 2147483647, %v264
        %v266 = vadd.f32 %v260, %v265
        %v267 = vmin.f32 %v243, %v266
        %s268 = sadd.s32 %s197, 12
        %s269 = sld [smem:[#allocation2 + %s268]]
        %v270 = vstv %s269
        %v271 = vsub.f32 %v190, %v270
        %v272 = vand.u32 2147483647, %v271
        %s273 = sadd.s32 %s197, 13
        %s274 = sld [smem:[#allocation2 + %s273]]
        %v275 = vstv %s274
        %v276 = vsub.f32 %v192, %v275
        %v277 = vand.u32 2147483647, %v276
        %v278 = vadd.f32 %v272, %v277
        %s279 = sadd.s32 %s197, 14
        %s280 = sld [smem:[#allocation2 + %s279]]
        %v281 = vstv %s280
        %v282 = vsub.f32 %v194, %v281
        %v283 = vand.u32 2147483647, %v282
        %v284 = vadd.f32 %v278, %v283
        %s285 = sadd.s32 %s197, 15
        %s286 = sld [smem:[#allocation2 + %s285]]
        %v287 = vstv %s286
        %v288 = vsub.f32 %v196, %v287
        %v289 = vand.u32 2147483647, %v288
        %v290 = vadd.f32 %v284, %v289
        %v291 = vmin.f32 %v267, %v290
        %s292 = sadd.s32 %s197, 16
        %s293 = sld [smem:[#allocation2 + %s292]]
        %v294 = vstv %s293
        %v295 = vsub.f32 %v190, %v294
        %v296 = vand.u32 2147483647, %v295
        %s297 = sadd.s32 %s197, 17
        %s298 = sld [smem:[#allocation2 + %s297]]
        %v299 = vstv %s298
        %v300 = vsub.f32 %v192, %v299
        %v301 = vand.u32 2147483647, %v300
        %v302 = vadd.f32 %v296, %v301
        %s303 = sadd.s32 %s197, 18
        %s304 = sld [smem:[#allocation2 + %s303]]
        %v305 = vstv %s304
        %v306 = vsub.f32 %v194, %v305
        %v307 = vand.u32 2147483647, %v306
        %v308 = vadd.f32 %v302, %v307
        %s309 = sadd.s32 %s197, 19
        %s310 = sld [smem:[#allocation2 + %s309]]
        %v311 = vstv %s310
        %v312 = vsub.f32 %v196, %v311
        %v313 = vand.u32 2147483647, %v312
        %v314 = vadd.f32 %v308, %v313
        %v315 = vmin.f32 %v291, %v314
        %vm316 = vcmp.lt.f32.partialorder %v315, 1e+08
        %v317 = vsel %vm316, %v315, 0.0
        %318 = vst [vmem:[%s189] sm:$0x1] %v317
        %s319 = sand.u32 %s91, 1
        %s320 = scalar_lea.sflag [#allocation4], %s319
        %s321 = sand.u32 %s91, 1
        %s322 = scalar_lea.vmem [#allocation7], %s321
        // Predicated region
        $region37: #{tpu_custom_call.1} parent=27 // pred_check
          %p323 = pneg %p101
        $region38: #{tpu_custom_call.1} parent=27 // pred_check_branch
          %325 = sbr.rel (%p323) target = $region40
        $region39: #{tpu_custom_call.1} parent=27 // pred_region
          %s327 = ssub.s32 16, 16
          %328 = vsyncadd %s320, %s327
          %s329 = sadd.s32 %s25, %s24
          %s330 = smul.addr %s329, 16
          %s331 = scalar_lea.hbm %s2, %s330
          %s333 = sshll.u32 %s322, 4
          %s334 = int_to_ptr.vmem [resolvable:$true] %s333
          %336 = dma.vmem_to_hbm [thread:$0]  %s334, 16, %s331, %s320
        $region40: #{tpu_custom_call.1} parent=27 // pred_fallthru
          _
      $region28: #{tpu_custom_call.1} parent=5 // pred_fallthru
        _
      %p337 = scmp.le.s32.totalorder 2, %s15
      // Predicated region
      $region41: #{tpu_custom_call.1} parent=5 // pred_check
        %p338 = pneg %p337
      $region42: #{tpu_custom_call.1} parent=5 // pred_check_branch
        %340 = sbr.rel (%p338) target = $region44
      $region43: #{tpu_custom_call.1} parent=5 // pred_region
        %s341 = ssub.s32 %s15, 2
        // Predicated region
        $region45: #{tpu_custom_call.1} parent=43 // pred_check
          %p342 = pneg %p107
        $region46: #{tpu_custom_call.1} parent=43 // pred_check_branch
          %344 = sbr.rel (%p342) target = $region48
        $region47: #{tpu_custom_call.1} parent=43 // pred_region
          %s345 = sand.u32 %s92, 1
          %s346 = scalar_lea.sflag [#allocation4], %s345
          %s347 = sand.u32 %s92, 1
          %s348 = scalar_lea.vmem [#allocation7], %s347
          %349 = dma.done %s346, 16
        $region48: #{tpu_custom_call.1} parent=43 // pred_fallthru
          _
      $region44: #{tpu_custom_call.1} parent=5 // pred_fallthru
        _
    $region6: #{tpu_custom_call.1} parent=1 // loop_footer
      %s19 = sadd.s32 1, %s15
    $region7: #{tpu_custom_call.1} parent=1 // loop_footer_branch
      %14 = sbr.rel target = $region3
    $region8: #{tpu_custom_call.1} parent=1 // loop_exit
      _
    %350 = vsyncpa [#allocation3], 1
    %s351 = scalar_lea.sflag [#allocation3], 1
    %352 = vsyncpa %s351, 1
    %353 = vsyncpa [#allocation4], 1
    %s354 = scalar_lea.sflag [#allocation4], 1
    %355 = vsyncpa %s354, 1
    %356 = vsyncpa [#allocation5], 1
    %s357 = scalar_lea.sflag [#allocation5], 1
    %358 = vsyncpa %s357, 1

</llo_original>
